<compile_context>
chip_gen: v7x
topology: tpu7x:2x2x1
jax: 0.10.0
libtpu: 0.0.40
codegen_flags: <defaults>
</compile_context>

<pallas_src>
import jax
import jax.numpy as jnp
from jax import lax
from jax.experimental import pallas as pl
from jax.experimental.pallas import tpu as pltpu

_PAD_BIAS = -1e30                  # finite: 0 * (-inf) through the MXU = NaN
_DEFAULT_TILE_N = 2048             # rows per grid step (fits v7x 64 MiB VMEM)
_VMEM_LIMIT_BYTES = 48 * 1024 * 1024


def _round_up(x, m):
    return (x + m - 1) // m * m


def pad_bigram_table(table):
    """Pad a (V, V) embedding table to (Vp, Vp), Vp = round_up(V, 128).

    Padded entries are pre-biased to -1e30 so padded classes contribute
    exp(-1e30 - m) == 0 to the softmax/CE denominator (no in-kernel class
    mask).  Padded rows are never selected (token ids < V).  Call ONCE and
    reuse across forward calls: it is a full-table HBM rewrite.
    """
    v = table.shape[0]
    vp = _round_up(v, 128)
    return jnp.full((vp, vp), _PAD_BIAS, jnp.float32).at[:v, :v].set(
        table.astype(jnp.float32))


def _gather_logits(idx_col, table_ref):
    """Embedding row-gather as one-hot @ table on the MXU (exact f32)."""
    tile_n = idx_col.shape[0]
    vp = table_ref.shape[1]
    col = lax.broadcasted_iota(jnp.int32, (tile_n, vp), 1)      # lane iota
    onehot = (col == idx_col).astype(jnp.float32)               # (tile_n, vp)
    logits = jnp.dot(onehot, table_ref[...],
                     preferred_element_type=jnp.float32,
                     precision=lax.Precision.HIGHEST)           # exact gather
    return logits, col


def _ce_partial(it_ref, table_ref):
    """Logits for one tile + masked partial sum of per-row cross-entropy."""
    it = it_ref[...]                                            # (tile_n, 3) i32
    idx = it[:, 0:1]
    tgt = it[:, 1:2]
    valid = it[:, 2:3].astype(jnp.float32)                      # 1 real / 0 pad
    logits, col = _gather_logits(idx, table_ref)
    # Numerically stable CE. Padded classes already carry -1e30 from the
    # pre-biased table, so no class mask is needed here.
    m = jnp.max(logits, axis=-1, keepdims=True)
    lse = m + jnp.log(jnp.sum(jnp.exp(logits - m), axis=-1, keepdims=True))
    tgt_logit = jnp.sum(jnp.where(col == tgt, logits, 0.0),
                        axis=-1, keepdims=True)
    nll = (lse - tgt_logit) * valid                             # pad rows -> 0
    partial = jnp.sum(nll, keepdims=True)                       # (1, 1)
    return logits, partial


def _bigram_loss_kernel(it_ref, table_ref, logits_ref, nll_ref):
    logits, partial = _ce_partial(it_ref, table_ref)
    logits_ref[...] = logits
    nll_ref[...] = jnp.broadcast_to(partial, nll_ref.shape)     # lane-dense splat


def _bigram_loss_only_kernel(it_ref, table_ref, nll_ref):
    _, partial = _ce_partial(it_ref, table_ref)
    nll_ref[...] = jnp.broadcast_to(partial, nll_ref.shape)


def _bigram_logits_kernel(it_ref, table_ref, logits_ref):
    idx = it_ref[...][:, 0:1]
    logits, _ = _gather_logits(idx, table_ref)
    logits_ref[...] = logits


def bigram_forward(idx, table, target=None, *, vocab_size=None, tile_n=None,
                   return_logits=True, return_padded=False):
    """Pallas-TPU equivalent of BigramLanguageModel.forward.

    idx:    (B, T) int token ids.
    table:  raw (V, V) nn.Embedding weight, OR the (Vp, Vp) result of
            pad_bigram_table(table) together with vocab_size=V (preferred:
            pad once, reuse -- avoids a per-call full-table HBM rewrite).
    target: optional (B, T) int token ids.
    return_logits: if False (and target given) skip the (N, Vp) logits
            writeback -- the dominant HBM stream in the loss path.
    return_padded: if True skip the [:N, :V] de-pad slice (an extra strided
            HBM copy); padded classes carry a -1e30 bias (softmax prob 0).

    Returns (logits, loss), matching the PyTorch module:
      target given -> logits (B*T, V) [or padded / None], scalar loss
      target None  -> logits (B, T, V) [or padded], None
    """
    B, T = idx.shape
    N = B * T
    v_real = int(table.shape[0]) if vocab_size is None else int(vocab_size)
    # Keep Vp minimal (store/VPU bound, not MXU bound).
    Vp = _round_up(v_real, 128)

    if table.shape[0] == Vp and Vp != v_real:
        table_p = table.astype(jnp.float32)       # already padded by caller
    elif table.shape[0] == v_real:
        table_p = pad_bigram_table(table)         # per-call fallback
    else:
        raise ValueError(f"table shape {table.shape} inconsistent with "
                         f"vocab_size={v_real}")

    # Row tiling. Per-step VMEM at tile_n=2048, Vp=128:
    #   2x(tile_n*Vp*4) logits bufs + 2x(tile_n*128*4) lane-padded int input
    #   + 2x(Vp*Vp*4) table + ~3 live (tile_n,Vp) f32 intermediates  ~= 8 MiB,
    # comfortably inside v7x's 64 MiB physical / 48 MiB requested limit (and
    # trivially inside 128 MiB on v5e/v6e). 4096 also fits, 2048 is already
    # well past the step-overhead knee.
    if tile_n is None:
        tile_n = min(_DEFAULT_TILE_N, _round_up(N, 8))
    tile_n = max(8, _round_up(tile_n, 8))
    n_pad = _round_up(N, tile_n)
    num_tiles = n_pad // tile_n

    # Fused (idx, target, row-valid) int32 input: one small DMA per step.
    it = jnp.zeros((n_pad, 3), jnp.int32)
    it = it.at[:N, 0].set(idx.reshape(N).astype(jnp.int32))
    it = it.at[:N, 2].set(1)
    if target is not None:
        it = it.at[:N, 1].set(target.reshape(N).astype(jnp.int32))

    grid = (num_tiles,)
    it_spec = pl.BlockSpec((tile_n, 3), lambda i: (i, 0))
    table_spec = pl.BlockSpec((Vp, Vp), lambda i: (0, 0))        # VMEM resident
    logits_spec = pl.BlockSpec((tile_n, Vp), lambda i: (i, 0))   # lane-dense out
    nll_spec = pl.BlockSpec((8, 128), lambda i: (i, 0))          # lane-dense out
    compiler_params = pltpu.CompilerParams(
        dimension_semantics=("parallel",),                       # v7x: 2 TCs
        vmem_limit_bytes=_VMEM_LIMIT_BYTES)

    if target is None:
        logits_p = pl.pallas_call(
            _bigram_logits_kernel,
            out_shape=jax.ShapeDtypeStruct((n_pad, Vp), jnp.float32),
            grid=grid,
            in_specs=[it_spec, table_spec],
            out_specs=logits_spec,
            compiler_params=compiler_params,
        )(it, table_p)
        if return_padded:
            return logits_p[:N].reshape(B, T, Vp), None
        return logits_p[:N, :v_real].reshape(B, T, v_real), None

    if return_logits:
        logits_p, nll_part = pl.pallas_call(
            _bigram_loss_kernel,
            out_shape=(
                jax.ShapeDtypeStruct((n_pad, Vp), jnp.float32),
                jax.ShapeDtypeStruct((num_tiles * 8, 128), jnp.float32),
            ),
            grid=grid,
            in_specs=[it_spec, table_spec],
            out_specs=(logits_spec, nll_spec),
            compiler_params=compiler_params,
        )(it, table_p)
    else:
        nll_part = pl.pallas_call(
            _bigram_loss_only_kernel,
            out_shape=jax.ShapeDtypeStruct((num_tiles * 8, 128), jnp.float32),
            grid=grid,
            in_specs=[it_spec, table_spec],
            out_specs=nll_spec,
            compiler_params=compiler_params,
        )(it, table_p)
        logits_p = None

    # Per-tile partial sums were splatted over (8,128) blocks; pick one copy
    # per tile and finish the mean over the N real rows.
    loss = jnp.sum(nll_part[::8, 0]) / N

    if logits_p is None:
        return None, loss
    if return_padded:
        return logits_p, loss        # rows >= N and cols >= V are padding
    return logits_p[:N, :v_real], loss


def _reference(idx, table, target):
    logits = table[idx]                                   # (B, T, V)
    B, T, V = logits.shape
    lf = logits.reshape(B * T, V)
    tf = target.reshape(B * T)
    lse = jax.scipy.special.logsumexp(lf, axis=-1)
    loss = jnp.mean(lse - lf[jnp.arange(B * T), tf])
    return lf, loss


if __name__ == "__main__":
    key = jax.random.PRNGKey(0)
    k_tab, k_idx, k_tgt = jax.random.split(key, 3)

    vocab_size = 65   # e.g. tiny-shakespeare char vocab
    B, T = 2, 8

    # nn.Embedding default init: N(0, 1)
    table = jax.random.normal(k_tab, (vocab_size, vocab_size), jnp.float32)
    idx = jax.random.randint(k_idx, (B, T), 0, vocab_size, jnp.int32)
    target = jax.random.randint(k_tgt, (B, T), 0, vocab_size, jnp.int32)

    # Pad/bias the table ONCE and reuse across calls (perf review item).
    table_p = pad_bigram_table(table)

    ref_logits, ref_loss = _reference(idx, table, target)

    # Training path: logits + loss (matches PyTorch's .view(B*T, C) logits).
    logits, loss = bigram_forward(idx, table_p, target, vocab_size=vocab_size)
    jax.block_until_ready((logits, loss))
    assert logits.shape == (B * T, vocab_size)
    assert jnp.allclose(logits, ref_logits, atol=1e-5, rtol=1e-5)
    assert jnp.allclose(loss, ref_loss, atol=1e-5, rtol=1e-5)

    # Loss-only variant: no logits HBM writeback.
    none_logits, loss_only = bigram_forward(idx, table_p, target,
                                            vocab_size=vocab_size,
                                            return_logits=False)
    jax.block_until_ready(loss_only)
    assert none_logits is None
    assert jnp.allclose(loss_only, ref_loss, atol=1e-5, rtol=1e-5)

    # Raw-table fallback path (per-call padding) gives the same numerics.
    _, loss_raw = bigram_forward(idx, table, target, return_logits=False)
    jax.block_until_ready(loss_raw)
    assert jnp.allclose(loss_raw, ref_loss, atol=1e-5, rtol=1e-5)

    # target=None (inference / generate()) branch: logits only.
    logits_only, none_loss = bigram_forward(idx, table_p, None,
                                            vocab_size=vocab_size)
    jax.block_until_ready(logits_only)
    assert none_loss is None
    assert logits_only.shape == (B, T, vocab_size)
    assert jnp.allclose(logits_only, table[idx], atol=1e-5, rtol=1e-5)

    print("KERNEL_OK")
</pallas_src>

<mosaic_0001>
module attributes {stable_mosaic.version = 11 : i64} {
  func.func @_bigram_loss_kernel(%arg0: i32, %arg1: memref<16x3xi32, #tpu.memory_space<vmem>>, %arg2: memref<128x128xf32, #tpu.memory_space<vmem>>, %arg3: memref<16x128xf32, #tpu.memory_space<vmem>>, %arg4: memref<8x128xf32, #tpu.memory_space<vmem>>) attributes {dimension_semantics = [#tpu.dimension_semantics<parallel>], iteration_bounds = array<i64: 1>, scalar_prefetch = 0 : i64, scratch_operands = 0 : i64, tpu.core_type = #tpu.core_type<tc>, window_params = [{transform_indices = @transform_0, window_bounds = array<i64: 16, 3>}, {pipeline_mode = #tpu.pipeline_mode<synchronous>, transform_indices = @transform_1, window_bounds = array<i64: 128, 128>}, {transform_indices = @transform_2, window_bounds = array<i64: 16, 128>}, {transform_indices = @transform_3, window_bounds = array<i64: 8, 128>}]} {
    %c0 = arith.constant 0 : index
    %c0_0 = arith.constant 0 : index
    %0 = vector.load %arg1[%c0, %c0_0] : memref<16x3xi32, #tpu.memory_space<vmem>>, vector<16x3xi32>
    %1 = vector.extract_strided_slice %0 {offsets = [0, 0], sizes = [16, 1], strides = [1, 1]} : vector<16x3xi32> to vector<16x1xi32>
    %2 = vector.extract_strided_slice %0 {offsets = [0, 1], sizes = [16, 1], strides = [1, 1]} : vector<16x3xi32> to vector<16x1xi32>
    %3 = vector.extract_strided_slice %0 {offsets = [0, 2], sizes = [16, 1], strides = [1, 1]} : vector<16x3xi32> to vector<16x1xi32>
    %4 = arith.sitofp %3 : vector<16x1xi32> to vector<16x1xf32>
    %5 = tpu.iota {dimensions = array<i32: 1>} : vector<16x128xi32>
    %6 = vector.broadcast %1 : vector<16x1xi32> to vector<16x128xi32>
    %7 = arith.cmpi eq, %5, %6 : vector<16x128xi32>
    %8 = arith.extui %7 : vector<16x128xi1> to vector<16x128xi32>
    %9 = arith.sitofp %8 : vector<16x128xi32> to vector<16x128xf32>
    %c0_1 = arith.constant 0 : index
    %c0_2 = arith.constant 0 : index
    %10 = vector.load %arg2[%c0_1, %c0_2] : memref<128x128xf32, #tpu.memory_space<vmem>>, vector<128x128xf32>
    %cst = arith.constant dense<0.000000e+00> : vector<16x128xf32>
    %11 = tpu.matmul %9, %10, %cst {dimension_numbers = #tpu.dot_dimension_numbers<[1], [0], [0], [1], [0, 0, 1, 1], [], []>, precision = #tpu.contract_precision<fp32>} : vector<16x128xf32>, vector<128x128xf32>, vector<16x128xf32> -> vector<16x128xf32>
    %cst_3 = arith.constant dense<0xFF800000> : vector<16xf32>
    %12 = vector.multi_reduction <maximumf>, %11, %cst_3 [1] : vector<16x128xf32> to vector<16xf32>
    %13 = vector.shape_cast %12 : vector<16xf32> to vector<16x1xf32>
    %14 = vector.broadcast %13 : vector<16x1xf32> to vector<16x128xf32>
    %15 = arith.subf %11, %14 : vector<16x128xf32>
    %16 = math.exp %15 : vector<16x128xf32>
    %cst_4 = arith.constant dense<0.000000e+00> : vector<16xf32>
    %17 = vector.multi_reduction <add>, %16, %cst_4 [1] : vector<16x128xf32> to vector<16xf32>
    %18 = vector.shape_cast %17 : vector<16xf32> to vector<16x1xf32>
    %19 = math.log %18 : vector<16x1xf32>
    %20 = arith.addf %13, %19 : vector<16x1xf32>
    %21 = vector.broadcast %2 : vector<16x1xi32> to vector<16x128xi32>
    %22 = arith.cmpi eq, %5, %21 : vector<16x128xi32>
    %cst_5 = arith.constant 0.000000e+00 : f32
    %23 = vector.broadcast %cst_5 : f32 to vector<16x128xf32>
    %24 = arith.select %22, %11, %23 : vector<16x128xi1>, vector<16x128xf32>
    %cst_6 = arith.constant dense<0.000000e+00> : vector<16xf32>
    %25 = vector.multi_reduction <add>, %24, %cst_6 [1] : vector<16x128xf32> to vector<16xf32>
    %26 = vector.shape_cast %25 : vector<16xf32> to vector<16x1xf32>
    %27 = arith.subf %20, %26 : vector<16x1xf32>
    %28 = arith.mulf %27, %4 : vector<16x1xf32>
    %29 = vector.shape_cast %28 : vector<16x1xf32> to vector<1x16x1xf32>
    %cst_7 = arith.constant dense<0.000000e+00> : vector<1xf32>
    %30 = vector.multi_reduction <add>, %29, %cst_7 [1, 2] : vector<1x16x1xf32> to vector<1xf32>
    %31 = vector.shape_cast %30 : vector<1xf32> to vector<1x1x1xf32>
    %32 = vector.extract %31[0, 0, 0] : f32 from vector<1x1x1xf32>
    %33 = vector.broadcast %32 : f32 to vector<1x1xf32>
    %c0_8 = arith.constant 0 : index
    %c0_9 = arith.constant 0 : index
    %34 = vector.load %arg3[%c0_8, %c0_9] : memref<16x128xf32, #tpu.memory_space<vmem>>, vector<16x128xf32>
    tpu.vector_store %arg3[%c0_8, %c0_9], %11 {strides = array<i32>} : memref<16x128xf32, #tpu.memory_space<vmem>>, vector<16x128xf32>,
    %35 = vector.shape_cast %33 : vector<1x1xf32> to vector<1x1xf32>
    %36 = vector.broadcast %35 : vector<1x1xf32> to vector<8x128xf32>
    %c0_10 = arith.constant 0 : index
    %c0_11 = arith.constant 0 : index
    %37 = vector.load %arg4[%c0_10, %c0_11] : memref<8x128xf32, #tpu.memory_space<vmem>>, vector<8x128xf32>
    tpu.vector_store %arg4[%c0_10, %c0_11], %36 {strides = array<i32>} : memref<8x128xf32, #tpu.memory_space<vmem>>, vector<8x128xf32>,
    return
  }
  func.func @transform_0(%arg0: i32) -> (i32, i32) {
    %c0_i32 = arith.constant 0 : i32
    %c0_i32_0 = arith.constant 0 : i32
    return %arg0, %c0_i32 : i32, i32
  }
  func.func @transform_1(%arg0: i32) -> (i32, i32) {
    %c0_i32 = arith.constant 0 : i32
    %c0_i32_0 = arith.constant 0 : i32
    %c0_i32_1 = arith.constant 0 : i32
    return %c0_i32, %c0_i32_0 : i32, i32
  }
  func.func @transform_2(%arg0: i32) -> (i32, i32) {
    %c0_i32 = arith.constant 0 : i32
    %c0_i32_0 = arith.constant 0 : i32
    return %arg0, %c0_i32 : i32, i32
  }
  func.func @transform_3(%arg0: i32) -> (i32, i32) {
    %c0_i32 = arith.constant 0 : i32
    %c0_i32_0 = arith.constant 0 : i32
    return %arg0, %c0_i32 : i32, i32
  }
}

</mosaic_0001>

<llo_original>
// kernel: tpu_custom_call.1
$region0: #{tpu_custom_call.1}
  #allocation0 [shape = 'u32[]', space=smem, size = 0x4, offset = 0x4, fixed_abs, tag = 'smem constant byte address 0x4 - core index']
  #allocation1 [shape = 'u32[144,128]{1,0:T(1,128)}', space=vmem, size = 0x12000, scoped, tag = 'internal scratch']
  %s0 = inlined_call_operand.vmem [shape: s32[16,3], index: 0, kind: input, shape index: {}]
  %s1 = inlined_call_operand.hbm [shape: f32[128,128], index: 1, kind: input, shape index: {}]
  %s2 = inlined_call_operand.hbm [shape: f32[16,128], index: 2, kind: output, shape index: {0}]
  %s3 = inlined_call_operand.hbm [shape: f32[8,128], index: 3, kind: output, shape index: {1}]
  %4 = xla_tuple %s2, %s3
  %s5 = sld [smem:[#allocation0]]
  $region30: #{tpu_custom_call.1} parent=0
    _
  %s7 = ssub.s32 1, %s5
  %s8 = scalar_select 0, %s7, %s5
  $region1: #{tpu_custom_call.1} parent=0
    #allocation2 [shape = 'u8[65536]{0}', space=vmem, size = 0x10000, scoped, tag = 'input window, operand 1, single buffered']
    #allocation3 [shape = 's32[1]{0}', space=sflag, size = 0x4, scoped, tag = 'scoped memory for tpu_custom_call.1']
    #allocation4 [shape = 's32[1]{0}', space=sflag, size = 0x4, scoped, tag = 'scoped memory for tpu_custom_call.1']
    #allocation5 [shape = 'u8[8192]{0}', space=vmem, size = 0x2000, scoped, tag = 'output window, operand 0, single buffered']
    #allocation6 [shape = 'u8[4096]{0}', space=vmem, size = 0x1000, scoped, tag = 'output window, operand 1, single buffered']
    #allocation7 [shape = 's32[1]{0}', space=sflag, size = 0x4, scoped, tag = 'scoped memory for tpu_custom_call.1']
    %9 = vsyncpa [#allocation3], 0
    %10 = vsyncpa [#allocation4], 0
    %11 = vsyncpa [#allocation7], 0
    // Predicated region
    $region2: #{tpu_custom_call.1} parent=1 // pred_check
      _
    $region3: #{tpu_custom_call.1} parent=1 // pred_check_branch
      %13 = sbr.rel (0) target = $region5
    $region4: #{tpu_custom_call.1} parent=1 // pred_region
      _
    $region5: #{tpu_custom_call.1} parent=1 // pred_fallthru
      _
    // Predicated region
    $region6: #{tpu_custom_call.1} parent=1 // pred_check
      _
    $region7: #{tpu_custom_call.1} parent=1 // pred_check_branch
      %15 = sbr.rel (0) target = $region9
    $region8: #{tpu_custom_call.1} parent=1 // pred_region
      %s17 = ssub.s32 2048, 2048
      %18 = vsyncadd [#allocation3], %s17
      %s19 = sshll.u32 [#allocation2], 4
      %s20 = int_to_ptr.vmem [resolvable:$true] %s19
      %25 = dma.hbm_to_vmem [thread:$0]  %s1, 2048, %s20, [#allocation3], 128, 128, 8
    $region9: #{tpu_custom_call.1} parent=1 // pred_fallthru
      _
    // Predicated region
    $region10: #{tpu_custom_call.1} parent=1 // pred_check
      _
    $region11: #{tpu_custom_call.1} parent=1 // pred_check_branch
      %27 = sbr.rel (0) target = $region13
    $region12: #{tpu_custom_call.1} parent=1 // pred_region
      %28 = dma.done [#allocation3], 2048
    $region13: #{tpu_custom_call.1} parent=1 // pred_fallthru
      _
    %v29 = vld [vmem:[%s0] sm:$0xff]
    %v30 = vld [vmem:[%s0 + $0x8] sm:$0xff]
    %v31 = vcvt.s32.f32 %v29
    %v32 = vcvt.s32.f32 %v30
    %v33 = vlaneseq
    %v34 = vand.u32 %v33, 127
    %35 = vset.pattern.permute.xlu0 0
    %36 = vperm.xlu0 %35, %v29
    %v37 = vpop.permute.xlu0 %36
    %38 = vset.pattern.permute.xlu0 0
    %39 = vperm.xlu0 %38, %v30
    %v40 = vpop.permute.xlu0 %39
    %vm41 = vcmp.eq.s32.totalorder %v34, %v37
    %vm42 = vcmp.eq.s32.totalorder %v34, %v40
    %v43 = vsel %vm41, 1, 0
    %v44 = vsel %vm42, 1, 0
    %v45 = vcvt.s32.f32 %v43
    %v46 = vcvt.s32.f32 %v44
    %v47 = vld [vmem:[#allocation2] sm:$0xff]
    %v48 = vld [vmem:[#allocation2 + $0x8] sm:$0xff]
    %v49 = vld [vmem:[#allocation2 + $0x10] sm:$0xff]
    %v50 = vld [vmem:[#allocation2 + $0x18] sm:$0xff]
    %v51 = vld [vmem:[#allocation2 + $0x20] sm:$0xff]
    %v52 = vld [vmem:[#allocation2 + $0x28] sm:$0xff]
    %v53 = vld [vmem:[#allocation2 + $0x30] sm:$0xff]
    %v54 = vld [vmem:[#allocation2 + $0x38] sm:$0xff]
    %v55 = vld [vmem:[#allocation2 + $0x40] sm:$0xff]
    %v56 = vld [vmem:[#allocation2 + $0x48] sm:$0xff]
    %v57 = vld [vmem:[#allocation2 + $0x50] sm:$0xff]
    %v58 = vld [vmem:[#allocation2 + $0x58] sm:$0xff]
    %v59 = vld [vmem:[#allocation2 + $0x60] sm:$0xff]
    %v60 = vld [vmem:[#allocation2 + $0x68] sm:$0xff]
    %v61 = vld [vmem:[#allocation2 + $0x70] sm:$0xff]
    %v62 = vld [vmem:[#allocation2 + $0x78] sm:$0xff]
    %63 = vmatprep.subr.mxu0 0.0
    %v64 = vand.u32 %v47, 4294901760
    %65 = vmatpush1.msra.mxu0 %v64
    %66 = vmatprep.subr.mxu0 0.0
    %v67 = vand.u32 %v48, 4294901760
    %68 = vmatpush1.msra.mxu0 %v67
    %69 = vmatprep.subr.mxu0 0.0
    %v70 = vand.u32 %v49, 4294901760
    %71 = vmatpush1.msra.mxu0 %v70
    %72 = vmatprep.subr.mxu0 0.0
    %v73 = vand.u32 %v50, 4294901760
    %74 = vmatpush1.msra.mxu0 %v73
    %75 = vmatprep.subr.mxu0 0.0
    %v76 = vand.u32 %v51, 4294901760
    %77 = vmatpush1.msra.mxu0 %v76
    %78 = vmatprep.subr.mxu0 0.0
    %v79 = vand.u32 %v52, 4294901760
    %80 = vmatpush1.msra.mxu0 %v79
    %81 = vmatprep.subr.mxu0 0.0
    %v82 = vand.u32 %v53, 4294901760
    %83 = vmatpush1.msra.mxu0 %v82
    %84 = vmatprep.subr.mxu0 0.0
    %v85 = vand.u32 %v54, 4294901760
    %86 = vmatpush1.msra.mxu0 %v85
    %87 = vmatprep.subr.mxu0 0.0
    %v88 = vand.u32 %v55, 4294901760
    %89 = vmatpush1.msra.mxu0 %v88
    %90 = vmatprep.subr.mxu0 0.0
    %v91 = vand.u32 %v56, 4294901760
    %92 = vmatpush1.msra.mxu0 %v91
    %93 = vmatprep.subr.mxu0 0.0
    %v94 = vand.u32 %v57, 4294901760
    %95 = vmatpush1.msra.mxu0 %v94
    %96 = vmatprep.subr.mxu0 0.0
    %v97 = vand.u32 %v58, 4294901760
    %98 = vmatpush1.msra.mxu0 %v97
    %99 = vmatprep.subr.mxu0 0.0
    %v100 = vand.u32 %v59, 4294901760
    %101 = vmatpush1.msra.mxu0 %v100
    %102 = vmatprep.subr.mxu0 0.0
    %v103 = vand.u32 %v60, 4294901760
    %104 = vmatpush1.msra.mxu0 %v103
    %105 = vmatprep.subr.mxu0 0.0
    %v106 = vand.u32 %v61, 4294901760
    %107 = vmatpush1.msra.mxu0 %v106
    %108 = vmatprep.subr.mxu0 0.0
    %v109 = vand.u32 %v62, 4294901760
    %110 = vmatpush1.msra.mxu0 %v109
    %111 = vmatprep.subr.mxu0 0.0
    %112 = vmatpush1.msra.mxu0 0.0
    %113 = vmatprep.subr.mxu0 0.0
    %114 = vmatpush1.msra.mxu0 0.0
    %115 = vmatprep.subr.mxu0 0.0
    %116 = vmatpush1.msra.mxu0 0.0
    %117 = vmatprep.subr.mxu0 0.0
    %118 = vmatpush1.msra.mxu0 0.0
    %119 = vmatprep.subr.mxu0 0.0
    %120 = vmatpush1.msra.mxu0 0.0
    %121 = vmatprep.subr.mxu0 0.0
    %122 = vmatpush1.msra.mxu0 0.0
    %123 = vmatprep.subr.mxu0 0.0
    %124 = vmatpush1.msra.mxu0 0.0
    %125 = vmatprep.subr.mxu0 0.0
    %126 = vmatpush1.msra.mxu0 0.0
    %127 = vmatprep.subr.mxu0 0.0
    %128 = vmatpush1.msra.mxu0 0.0
    %129 = vmatprep.subr.mxu0 0.0
    %130 = vmatpush1.msra.mxu0 0.0
    %131 = vmatprep.subr.mxu0 0.0
    %132 = vmatpush1.msra.mxu0 0.0
    %133 = vmatprep.subr.mxu0 0.0
    %134 = vmatpush1.msra.mxu0 0.0
    %135 = vmatprep.subr.mxu0 0.0
    %136 = vmatpush1.msra.mxu0 0.0
    %137 = vmatprep.subr.mxu0 0.0
    %138 = vmatpush1.msra.mxu0 0.0
    %139 = vmatprep.subr.mxu0 0.0
    %140 = vmatpush1.msra.mxu0 0.0
    %141 = vmatprep.subr.mxu0 0.0
    %142 = vmatpush1.msra.mxu0 0.0
    %143 = vmatprep.mubr.f32.mxu0 0.0
    %v144 = vand.u32 %v45, 4294901760
    %v145 = vsub.f32 %v45, %v144
    %v146 = vand.u32 %v145, 4294901760
    %v147 = vsub.f32 %v145, %v146
    %v148 = vand.u32 %v147, 4294901760
    %149 = vmatmul.mubr.f32.gmra.mrb[0].mxu0 %v148
    %v150 = vpop.f32.mrb[0].mxu0
    %v151 = vadd.f32 0.0, %v150
    %v152 = vpop.f32.mrb[0].mxu0
    %153 = vmatprep.mubr.f32.mxu0 0.0
    %v154 = vand.u32 %v46, 4294901760
    %v155 = vsub.f32 %v46, %v154
    %v156 = vand.u32 %v155, 4294901760
    %v157 = vsub.f32 %v155, %v156
    %v158 = vand.u32 %v157, 4294901760
    %159 = vmatmul.mubr.f32.gmra.mrb[0].mxu0 %v158
    %v160 = vpop.f32.mrb[0].mxu0
    %v161 = vadd.f32 0.0, %v160
    %v162 = vpop.f32.mrb[0].mxu0
    %163 = vdwg.mxu0
    %164 = vmatprep.subr.mxu0 0.0
    %v165 = vand.u32 %v47, 4294901760
    %v166 = vsub.f32 %v47, %v165
    %v167 = vand.u32 %v166, 4294901760
    %v168 = vsub.f32 %v166, %v167
    %v169 = vand.u32 %v168, 4294901760
    %170 = vmatpush1.msra.mxu0 %v169
    %171 = vmatprep.subr.mxu0 0.0
    %v172 = vand.u32 %v48, 4294901760
    %v173 = vsub.f32 %v48, %v172
    %v174 = vand.u32 %v173, 4294901760
    %v175 = vsub.f32 %v173, %v174
    %v176 = vand.u32 %v175, 4294901760
    %177 = vmatpush1.msra.mxu0 %v176
    %178 = vmatprep.subr.mxu0 0.0
    %v179 = vand.u32 %v49, 4294901760
    %v180 = vsub.f32 %v49, %v179
    %v181 = vand.u32 %v180, 4294901760
    %v182 = vsub.f32 %v180, %v181
    %v183 = vand.u32 %v182, 4294901760
    %184 = vmatpush1.msra.mxu0 %v183
    %185 = vmatprep.subr.mxu0 0.0
    %v186 = vand.u32 %v50, 4294901760
    %v187 = vsub.f32 %v50, %v186
    %v188 = vand.u32 %v187, 4294901760
    %v189 = vsub.f32 %v187, %v188
    %v190 = vand.u32 %v189, 4294901760
    %191 = vmatpush1.msra.mxu0 %v190
    %192 = vmatprep.subr.mxu0 0.0
    %v193 = vand.u32 %v51, 4294901760
    %v194 = vsub.f32 %v51, %v193
    %v195 = vand.u32 %v194, 4294901760
    %v196 = vsub.f32 %v194, %v195
    %v197 = vand.u32 %v196, 4294901760
    %198 = vmatpush1.msra.mxu0 %v197
    %199 = vmatprep.subr.mxu0 0.0
    %v200 = vand.u32 %v52, 4294901760
    %v201 = vsub.f32 %v52, %v200
    %v202 = vand.u32 %v201, 4294901760
    %v203 = vsub.f32 %v201, %v202
    %v204 = vand.u32 %v203, 4294901760
    %205 = vmatpush1.msra.mxu0 %v204
    %206 = vmatprep.subr.mxu0 0.0
    %v207 = vand.u32 %v53, 4294901760
    %v208 = vsub.f32 %v53, %v207
    %v209 = vand.u32 %v208, 4294901760
    %v210 = vsub.f32 %v208, %v209
    %v211 = vand.u32 %v210, 4294901760
    %212 = vmatpush1.msra.mxu0 %v211
    %213 = vmatprep.subr.mxu0 0.0
    %v214 = vand.u32 %v54, 4294901760
    %v215 = vsub.f32 %v54, %v214
    %v216 = vand.u32 %v215, 4294901760
    %v217 = vsub.f32 %v215, %v216
    %v218 = vand.u32 %v217, 4294901760
    %219 = vmatpush1.msra.mxu0 %v218
    %220 = vmatprep.subr.mxu0 0.0
    %v221 = vand.u32 %v55, 4294901760
    %v222 = vsub.f32 %v55, %v221
    %v223 = vand.u32 %v222, 4294901760
    %v224 = vsub.f32 %v222, %v223
    %v225 = vand.u32 %v224, 4294901760
    %226 = vmatpush1.msra.mxu0 %v225
    %227 = vmatprep.subr.mxu0 0.0
    %v228 = vand.u32 %v56, 4294901760
    %v229 = vsub.f32 %v56, %v228
    %v230 = vand.u32 %v229, 4294901760
    %v231 = vsub.f32 %v229, %v230
    %v232 = vand.u32 %v231, 4294901760
    %233 = vmatpush1.msra.mxu0 %v232
    %234 = vmatprep.subr.mxu0 0.0
    %v235 = vand.u32 %v57, 4294901760
    %v236 = vsub.f32 %v57, %v235
    %v237 = vand.u32 %v236, 4294901760
    %v238 = vsub.f32 %v236, %v237
    %v239 = vand.u32 %v238, 4294901760
    %240 = vmatpush1.msra.mxu0 %v239
    %241 = vmatprep.subr.mxu0 0.0
    %v242 = vand.u32 %v58, 4294901760
    %v243 = vsub.f32 %v58, %v242
    %v244 = vand.u32 %v243, 4294901760
    %v245 = vsub.f32 %v243, %v244
    %v246 = vand.u32 %v245, 4294901760
    %247 = vmatpush1.msra.mxu0 %v246
    %248 = vmatprep.subr.mxu0 0.0
    %v249 = vand.u32 %v59, 4294901760
    %v250 = vsub.f32 %v59, %v249
    %v251 = vand.u32 %v250, 4294901760
    %v252 = vsub.f32 %v250, %v251
    %v253 = vand.u32 %v252, 4294901760
    %254 = vmatpush1.msra.mxu0 %v253
    %255 = vmatprep.subr.mxu0 0.0
    %v256 = vand.u32 %v60, 4294901760
    %v257 = vsub.f32 %v60, %v256
    %v258 = vand.u32 %v257, 4294901760
    %v259 = vsub.f32 %v257, %v258
    %v260 = vand.u32 %v259, 4294901760
    %261 = vmatpush1.msra.mxu0 %v260
    %262 = vmatprep.subr.mxu0 0.0
    %v263 = vand.u32 %v61, 4294901760
    %v264 = vsub.f32 %v61, %v263
    %v265 = vand.u32 %v264, 4294901760
    %v266 = vsub.f32 %v264, %v265
    %v267 = vand.u32 %v266, 4294901760
    %268 = vmatpush1.msra.mxu0 %v267
    %269 = vmatprep.subr.mxu0 0.0
    %v270 = vand.u32 %v62, 4294901760
    %v271 = vsub.f32 %v62, %v270
    %v272 = vand.u32 %v271, 4294901760
    %v273 = vsub.f32 %v271, %v272
    %v274 = vand.u32 %v273, 4294901760
    %275 = vmatpush1.msra.mxu0 %v274
    %276 = vmatprep.subr.mxu0 0.0
    %277 = vmatpush1.msra.mxu0 0.0
    %278 = vmatprep.subr.mxu0 0.0
    %279 = vmatpush1.msra.mxu0 0.0
    %280 = vmatprep.subr.mxu0 0.0
    %281 = vmatpush1.msra.mxu0 0.0
    %282 = vmatprep.subr.mxu0 0.0
    %283 = vmatpush1.msra.mxu0 0.0
    %284 = vmatprep.subr.mxu0 0.0
    %285 = vmatpush1.msra.mxu0 0.0
    %286 = vmatprep.subr.mxu0 0.0
    %287 = vmatpush1.msra.mxu0 0.0
    %288 = vmatprep.subr.mxu0 0.0
    %289 = vmatpush1.msra.mxu0 0.0
    %290 = vmatprep.subr.mxu0 0.0
    %291 = vmatpush1.msra.mxu0 0.0
    %292 = vmatprep.subr.mxu0 0.0
    %293 = vmatpush1.msra.mxu0 0.0
    %294 = vmatprep.subr.mxu0 0.0
    %295 = vmatpush1.msra.mxu0 0.0
    %296 = vmatprep.subr.mxu0 0.0
    %297 = vmatpush1.msra.mxu0 0.0
    %298 = vmatprep.subr.mxu0 0.0
    %299 = vmatpush1.msra.mxu0 0.0
    %300 = vmatprep.subr.mxu0 0.0
    %301 = vmatpush1.msra.mxu0 0.0
    %302 = vmatprep.subr.mxu0 0.0
    %303 = vmatpush1.msra.mxu0 0.0
    %304 = vmatprep.subr.mxu0 0.0
    %305 = vmatpush1.msra.mxu0 0.0
    %306 = vmatprep.subr.mxu0 0.0
    %307 = vmatpush1.msra.mxu0 0.0
    %308 = vmatprep.mubr.f32.mxu0 0.0
    %v309 = vand.u32 %v45, 4294901760
    %310 = vmatmul.mubr.f32.gmra.mrb[0].mxu0 %v309
    %v311 = vpop.f32.mrb[0].mxu0
    %v312 = vadd.f32 %v151, %v311
    %v313 = vpop.f32.mrb[0].mxu0
    %314 = vmatprep.mubr.f32.mxu0 0.0
    %v315 = vand.u32 %v46, 4294901760
    %316 = vmatmul.mubr.f32.gmra.mrb[0].mxu0 %v315
    %v317 = vpop.f32.mrb[0].mxu0
    %v318 = vadd.f32 %v161, %v317
    %v319 = vpop.f32.mrb[0].mxu0
    %320 = vdwg.mxu0
    %321 = vmatprep.subr.mxu0 0.0
    %v322 = vand.u32 %v47, 4294901760
    %v323 = vsub.f32 %v47, %v322
    %324 = vmatpush1.msra.mxu0 %v323
    %325 = vmatprep.subr.mxu0 0.0
    %v326 = vand.u32 %v48, 4294901760
    %v327 = vsub.f32 %v48, %v326
    %328 = vmatpush1.msra.mxu0 %v327
    %329 = vmatprep.subr.mxu0 0.0
    %v330 = vand.u32 %v49, 4294901760
    %v331 = vsub.f32 %v49, %v330
    %332 = vmatpush1.msra.mxu0 %v331
    %333 = vmatprep.subr.mxu0 0.0
    %v334 = vand.u32 %v50, 4294901760
    %v335 = vsub.f32 %v50, %v334
    %336 = vmatpush1.msra.mxu0 %v335
    %337 = vmatprep.subr.mxu0 0.0
    %v338 = vand.u32 %v51, 4294901760
    %v339 = vsub.f32 %v51, %v338
    %340 = vmatpush1.msra.mxu0 %v339
    %341 = vmatprep.subr.mxu0 0.0
    %v342 = vand.u32 %v52, 4294901760
    %v343 = vsub.f32 %v52, %v342
    %344 = vmatpush1.msra.mxu0 %v343
    %345 = vmatprep.subr.mxu0 0.0
    %v346 = vand.u32 %v53, 4294901760
    %v347 = vsub.f32 %v53, %v346
    %348 = vmatpush1.msra.mxu0 %v347
    %349 = vmatprep.subr.mxu0 0.0
    %v350 = vand.u32 %v54, 4294901760
    %v351 = vsub.f32 %v54, %v350
    %352 = vmatpush1.msra.mxu0 %v351
    %353 = vmatprep.subr.mxu0 0.0
    %v354 = vand.u32 %v55, 4294901760
    %v355 = vsub.f32 %v55, %v354
    %356 = vmatpush1.msra.mxu0 %v355
    %357 = vmatprep.subr.mxu0 0.0
    %v358 = vand.u32 %v56, 4294901760
    %v359 = vsub.f32 %v56, %v358
    %360 = vmatpush1.msra.mxu0 %v359
    %361 = vmatprep.subr.mxu0 0.0
    %v362 = vand.u32 %v57, 4294901760
    %v363 = vsub.f32 %v57, %v362
    %364 = vmatpush1.msra.mxu0 %v363
    %365 = vmatprep.subr.mxu0 0.0
    %v366 = vand.u32 %v58, 4294901760
    %v367 = vsub.f32 %v58, %v366
    %368 = vmatpush1.msra.mxu0 %v367
    %369 = vmatprep.subr.mxu0 0.0
    %v370 = vand.u32 %v59, 4294901760
    %v371 = vsub.f32 %v59, %v370
    %372 = vmatpush1.msra.mxu0 %v371
    %373 = vmatprep.subr.mxu0 0.0
    %v374 = vand.u32 %v60, 4294901760
    %v375 = vsub.f32 %v60, %v374
    %376 = vmatpush1.msra.mxu0 %v375
    %377 = vmatprep.subr.mxu0 0.0
    %v378 = vand.u32 %v61, 4294901760
    %v379 = vsub.f32 %v61, %v378
    %380 = vmatpush1.msra.mxu0 %v379
    %381 = vmatprep.subr.mxu0 0.0
    %v382 = vand.u32 %v62, 4294901760
    %v383 = vsub.f32 %v62, %v382
    %384 = vmatpush1.msra.mxu0 %v383
    %385 = vmatprep.subr.mxu0 0.0
    %386 = vmatpush1.msra.mxu0 0.0
    %387 = vmatprep.subr.mxu0 0.0
    %388 = vmatpush1.msra.mxu0 0.0
    %389 = vmatprep.subr.mxu0 0.0
    %390 = vmatpush1.msra.mxu0 0.0
    %391 = vmatprep.subr.mxu0 0.0
    %392 = vmatpush1.msra.mxu0 0.0
    %393 = vmatprep.subr.mxu0 0.0
    %394 = vmatpush1.msra.mxu0 0.0
    %395 = vmatprep.subr.mxu0 0.0
    %396 = vmatpush1.msra.mxu0 0.0
    %397 = vmatprep.subr.mxu0 0.0
    %398 = vmatpush1.msra.mxu0 0.0
    %399 = vmatprep.subr.mxu0 0.0
    %400 = vmatpush1.msra.mxu0 0.0
    %401 = vmatprep.subr.mxu0 0.0
    %402 = vmatpush1.msra.mxu0 0.0
    %403 = vmatprep.subr.mxu0 0.0
    %404 = vmatpush1.msra.mxu0 0.0
    %405 = vmatprep.subr.mxu0 0.0
    %406 = vmatpush1.msra.mxu0 0.0
    %407 = vmatprep.subr.mxu0 0.0
    %408 = vmatpush1.msra.mxu0 0.0
    %409 = vmatprep.subr.mxu0 0.0
    %410 = vmatpush1.msra.mxu0 0.0
    %411 = vmatprep.subr.mxu0 0.0
    %412 = vmatpush1.msra.mxu0 0.0
    %413 = vmatprep.subr.mxu0 0.0
    %414 = vmatpush1.msra.mxu0 0.0
    %415 = vmatprep.subr.mxu0 0.0
    %416 = vmatpush1.msra.mxu0 0.0
    %417 = vmatprep.mubr.f32.mxu0 0.0
    %v418 = vand.u32 %v45, 4294901760
    %v419 = vsub.f32 %v45, %v418
    %420 = vmatmul.mubr.f32.gmra.mrb[0].mxu0 %v419
    %v421 = vpop.f32.mrb[0].mxu0
    %v422 = vadd.f32 %v312, %v421
    %v423 = vpop.f32.mrb[0].mxu0
    %424 = vmatprep.mubr.f32.mxu0 0.0
    %v425 = vand.u32 %v46, 4294901760
    %v426 = vsub.f32 %v46, %v425
    %427 = vmatmul.mubr.f32.gmra.mrb[0].mxu0 %v426
    %v428 = vpop.f32.mrb[0].mxu0
    %v429 = vadd.f32 %v318, %v428
    %v430 = vpop.f32.mrb[0].mxu0
    %431 = vdwg.mxu0
    %432 = vmatprep.subr.mxu0 0.0
    %v433 = vand.u32 %v47, 4294901760
    %434 = vmatpush1.msra.mxu0 %v433
    %435 = vmatprep.subr.mxu0 0.0
    %v436 = vand.u32 %v48, 4294901760
    %437 = vmatpush1.msra.mxu0 %v436
    %438 = vmatprep.subr.mxu0 0.0
    %v439 = vand.u32 %v49, 4294901760
    %440 = vmatpush1.msra.mxu0 %v439
    %441 = vmatprep.subr.mxu0 0.0
    %v442 = vand.u32 %v50, 4294901760
    %443 = vmatpush1.msra.mxu0 %v442
    %444 = vmatprep.subr.mxu0 0.0
    %v445 = vand.u32 %v51, 4294901760
    %446 = vmatpush1.msra.mxu0 %v445
    %447 = vmatprep.subr.mxu0 0.0
    %v448 = vand.u32 %v52, 4294901760
    %449 = vmatpush1.msra.mxu0 %v448
    %450 = vmatprep.subr.mxu0 0.0
    %v451 = vand.u32 %v53, 4294901760
    %452 = vmatpush1.msra.mxu0 %v451
    %453 = vmatprep.subr.mxu0 0.0
    %v454 = vand.u32 %v54, 4294901760
    %455 = vmatpush1.msra.mxu0 %v454
    %456 = vmatprep.subr.mxu0 0.0
    %v457 = vand.u32 %v55, 4294901760
    %458 = vmatpush1.msra.mxu0 %v457
    %459 = vmatprep.subr.mxu0 0.0
    %v460 = vand.u32 %v56, 4294901760
    %461 = vmatpush1.msra.mxu0 %v460
    %462 = vmatprep.subr.mxu0 0.0
    %v463 = vand.u32 %v57, 4294901760
    %464 = vmatpush1.msra.mxu0 %v463
    %465 = vmatprep.subr.mxu0 0.0
    %v466 = vand.u32 %v58, 4294901760
    %467 = vmatpush1.msra.mxu0 %v466
    %468 = vmatprep.subr.mxu0 0.0
    %v469 = vand.u32 %v59, 4294901760
    %470 = vmatpush1.msra.mxu0 %v469
    %471 = vmatprep.subr.mxu0 0.0
    %v472 = vand.u32 %v60, 4294901760
    %473 = vmatpush1.msra.mxu0 %v472
    %474 = vmatprep.subr.mxu0 0.0
    %v475 = vand.u32 %v61, 4294901760
    %476 = vmatpush1.msra.mxu0 %v475
    %477 = vmatprep.subr.mxu0 0.0
    %v478 = vand.u32 %v62, 4294901760
    %479 = vmatpush1.msra.mxu0 %v478
    %480 = vmatprep.subr.mxu0 0.0
    %481 = vmatpush1.msra.mxu0 0.0
    %482 = vmatprep.subr.mxu0 0.0
    %483 = vmatpush1.msra.mxu0 0.0
    %484 = vmatprep.subr.mxu0 0.0
    %485 = vmatpush1.msra.mxu0 0.0
    %486 = vmatprep.subr.mxu0 0.0
    %487 = vmatpush1.msra.mxu0 0.0
    %488 = vmatprep.subr.mxu0 0.0
    %489 = vmatpush1.msra.mxu0 0.0
    %490 = vmatprep.subr.mxu0 0.0
    %491 = vmatpush1.msra.mxu0 0.0
    %492 = vmatprep.subr.mxu0 0.0
    %493 = vmatpush1.msra.mxu0 0.0
    %494 = vmatprep.subr.mxu0 0.0
    %495 = vmatpush1.msra.mxu0 0.0
    %496 = vmatprep.subr.mxu0 0.0
    %497 = vmatpush1.msra.mxu0 0.0
    %498 = vmatprep.subr.mxu0 0.0
    %499 = vmatpush1.msra.mxu0 0.0
    %500 = vmatprep.subr.mxu0 0.0
    %501 = vmatpush1.msra.mxu0 0.0
    %502 = vmatprep.subr.mxu0 0.0
    %503 = vmatpush1.msra.mxu0 0.0
    %504 = vmatprep.subr.mxu0 0.0
    %505 = vmatpush1.msra.mxu0 0.0
    %506 = vmatprep.subr.mxu0 0.0
    %507 = vmatpush1.msra.mxu0 0.0
    %508 = vmatprep.subr.mxu0 0.0
    %509 = vmatpush1.msra.mxu0 0.0
    %510 = vmatprep.subr.mxu0 0.0
    %511 = vmatpush1.msra.mxu0 0.0
    %512 = vmatprep.mubr.f32.mxu0 0.0
    %v513 = vand.u32 %v45, 4294901760
    %v514 = vsub.f32 %v45, %v513
    %v515 = vand.u32 %v514, 4294901760
    %516 = vmatmul.mubr.f32.gmra.mrb[0].mxu0 %v515
    %v517 = vpop.f32.mrb[0].mxu0
    %v518 = vadd.f32 %v422, %v517
    %v519 = vpop.f32.mrb[0].mxu0
    %520 = vmatprep.mubr.f32.mxu0 0.0
    %v521 = vand.u32 %v46, 4294901760
    %v522 = vsub.f32 %v46, %v521
    %v523 = vand.u32 %v522, 4294901760
    %524 = vmatmul.mubr.f32.gmra.mrb[0].mxu0 %v523
    %v525 = vpop.f32.mrb[0].mxu0
    %v526 = vadd.f32 %v429, %v525
    %v527 = vpop.f32.mrb[0].mxu0
    %528 = vdwg.mxu0
    %529 = vmatprep.subr.mxu0 0.0
    %v530 = vand.u32 %v47, 4294901760
    %v531 = vsub.f32 %v47, %v530
    %v532 = vand.u32 %v531, 4294901760
    %533 = vmatpush1.msra.mxu0 %v532
    %534 = vmatprep.subr.mxu0 0.0
    %v535 = vand.u32 %v48, 4294901760
    %v536 = vsub.f32 %v48, %v535
    %v537 = vand.u32 %v536, 4294901760
    %538 = vmatpush1.msra.mxu0 %v537
    %539 = vmatprep.subr.mxu0 0.0
    %v540 = vand.u32 %v49, 4294901760
    %v541 = vsub.f32 %v49, %v540
    %v542 = vand.u32 %v541, 4294901760
    %543 = vmatpush1.msra.mxu0 %v542
    %544 = vmatprep.subr.mxu0 0.0
    %v545 = vand.u32 %v50, 4294901760
    %v546 = vsub.f32 %v50, %v545
    %v547 = vand.u32 %v546, 4294901760
    %548 = vmatpush1.msra.mxu0 %v547
    %549 = vmatprep.subr.mxu0 0.0
    %v550 = vand.u32 %v51, 4294901760
    %v551 = vsub.f32 %v51, %v550
    %v552 = vand.u32 %v551, 4294901760
    %553 = vmatpush1.msra.mxu0 %v552
    %554 = vmatprep.subr.mxu0 0.0
    %v555 = vand.u32 %v52, 4294901760
    %v556 = vsub.f32 %v52, %v555
    %v557 = vand.u32 %v556, 4294901760
    %558 = vmatpush1.msra.mxu0 %v557
    %559 = vmatprep.subr.mxu0 0.0
    %v560 = vand.u32 %v53, 4294901760
    %v561 = vsub.f32 %v53, %v560
    %v562 = vand.u32 %v561, 4294901760
    %563 = vmatpush1.msra.mxu0 %v562
    %564 = vmatprep.subr.mxu0 0.0
    %v565 = vand.u32 %v54, 4294901760
    %v566 = vsub.f32 %v54, %v565
    %v567 = vand.u32 %v566, 4294901760
    %568 = vmatpush1.msra.mxu0 %v567
    %569 = vmatprep.subr.mxu0 0.0
    %v570 = vand.u32 %v55, 4294901760
    %v571 = vsub.f32 %v55, %v570
    %v572 = vand.u32 %v571, 4294901760
    %573 = vmatpush1.msra.mxu0 %v572
    %574 = vmatprep.subr.mxu0 0.0
    %v575 = vand.u32 %v56, 4294901760
    %v576 = vsub.f32 %v56, %v575
    %v577 = vand.u32 %v576, 4294901760
    %578 = vmatpush1.msra.mxu0 %v577
    %579 = vmatprep.subr.mxu0 0.0
    %v580 = vand.u32 %v57, 4294901760
    %v581 = vsub.f32 %v57, %v580
    %v582 = vand.u32 %v581, 4294901760
    %583 = vmatpush1.msra.mxu0 %v582
    %584 = vmatprep.subr.mxu0 0.0
    %v585 = vand.u32 %v58, 4294901760
    %v586 = vsub.f32 %v58, %v585
    %v587 = vand.u32 %v586, 4294901760
    %588 = vmatpush1.msra.mxu0 %v587
    %589 = vmatprep.subr.mxu0 0.0
    %v590 = vand.u32 %v59, 4294901760
    %v591 = vsub.f32 %v59, %v590
    %v592 = vand.u32 %v591, 4294901760
    %593 = vmatpush1.msra.mxu0 %v592
    %594 = vmatprep.subr.mxu0 0.0
    %v595 = vand.u32 %v60, 4294901760
    %v596 = vsub.f32 %v60, %v595
    %v597 = vand.u32 %v596, 4294901760
    %598 = vmatpush1.msra.mxu0 %v597
    %599 = vmatprep.subr.mxu0 0.0
    %v600 = vand.u32 %v61, 4294901760
    %v601 = vsub.f32 %v61, %v600
    %v602 = vand.u32 %v601, 4294901760
    %603 = vmatpush1.msra.mxu0 %v602
    %604 = vmatprep.subr.mxu0 0.0
    %v605 = vand.u32 %v62, 4294901760
    %v606 = vsub.f32 %v62, %v605
    %v607 = vand.u32 %v606, 4294901760
    %608 = vmatpush1.msra.mxu0 %v607
    %609 = vmatprep.subr.mxu0 0.0
    %610 = vmatpush1.msra.mxu0 0.0
    %611 = vmatprep.subr.mxu0 0.0
    %612 = vmatpush1.msra.mxu0 0.0
    %613 = vmatprep.subr.mxu0 0.0
    %614 = vmatpush1.msra.mxu0 0.0
    %615 = vmatprep.subr.mxu0 0.0
    %616 = vmatpush1.msra.mxu0 0.0
    %617 = vmatprep.subr.mxu0 0.0
    %618 = vmatpush1.msra.mxu0 0.0
    %619 = vmatprep.subr.mxu0 0.0
    %620 = vmatpush1.msra.mxu0 0.0
    %621 = vmatprep.subr.mxu0 0.0
    %622 = vmatpush1.msra.mxu0 0.0
    %623 = vmatprep.subr.mxu0 0.0
    %624 = vmatpush1.msra.mxu0 0.0
    %625 = vmatprep.subr.mxu0 0.0
    %626 = vmatpush1.msra.mxu0 0.0
    %627 = vmatprep.subr.mxu0 0.0
    %628 = vmatpush1.msra.mxu0 0.0
    %629 = vmatprep.subr.mxu0 0.0
    %630 = vmatpush1.msra.mxu0 0.0
    %631 = vmatprep.subr.mxu0 0.0
    %632 = vmatpush1.msra.mxu0 0.0
    %633 = vmatprep.subr.mxu0 0.0
    %634 = vmatpush1.msra.mxu0 0.0
    %635 = vmatprep.subr.mxu0 0.0
    %636 = vmatpush1.msra.mxu0 0.0
    %637 = vmatprep.subr.mxu0 0.0
    %638 = vmatpush1.msra.mxu0 0.0
    %639 = vmatprep.subr.mxu0 0.0
    %640 = vmatpush1.msra.mxu0 0.0
    %641 = vmatprep.mubr.f32.mxu0 0.0
    %v642 = vand.u32 %v45, 4294901760
    %643 = vmatmul.mubr.f32.gmra.mrb[0].mxu0 %v642
    %v644 = vpop.f32.mrb[0].mxu0
    %v645 = vadd.f32 %v518, %v644
    %v646 = vpop.f32.mrb[0].mxu0
    %647 = vmatprep.mubr.f32.mxu0 0.0
    %v648 = vand.u32 %v46, 4294901760
    %649 = vmatmul.mubr.f32.gmra.mrb[0].mxu0 %v648
    %v650 = vpop.f32.mrb[0].mxu0
    %v651 = vadd.f32 %v526, %v650
    %v652 = vpop.f32.mrb[0].mxu0
    %653 = vdwg.mxu0
    %654 = vmatprep.subr.mxu0 0.0
    %v655 = vand.u32 %v47, 4294901760
    %656 = vmatpush1.msra.mxu0 %v655
    %657 = vmatprep.subr.mxu0 0.0
    %v658 = vand.u32 %v48, 4294901760
    %659 = vmatpush1.msra.mxu0 %v658
    %660 = vmatprep.subr.mxu0 0.0
    %v661 = vand.u32 %v49, 4294901760
    %662 = vmatpush1.msra.mxu0 %v661
    %663 = vmatprep.subr.mxu0 0.0
    %v664 = vand.u32 %v50, 4294901760
    %665 = vmatpush1.msra.mxu0 %v664
    %666 = vmatprep.subr.mxu0 0.0
    %v667 = vand.u32 %v51, 4294901760
    %668 = vmatpush1.msra.mxu0 %v667
    %669 = vmatprep.subr.mxu0 0.0
    %v670 = vand.u32 %v52, 4294901760
    %671 = vmatpush1.msra.mxu0 %v670
    %672 = vmatprep.subr.mxu0 0.0
    %v673 = vand.u32 %v53, 4294901760
    %674 = vmatpush1.msra.mxu0 %v673
    %675 = vmatprep.subr.mxu0 0.0
    %v676 = vand.u32 %v54, 4294901760
    %677 = vmatpush1.msra.mxu0 %v676
    %678 = vmatprep.subr.mxu0 0.0
    %v679 = vand.u32 %v55, 4294901760
    %680 = vmatpush1.msra.mxu0 %v679
    %681 = vmatprep.subr.mxu0 0.0
    %v682 = vand.u32 %v56, 4294901760
    %683 = vmatpush1.msra.mxu0 %v682
    %684 = vmatprep.subr.mxu0 0.0
    %v685 = vand.u32 %v57, 4294901760
    %686 = vmatpush1.msra.mxu0 %v685
    %687 = vmatprep.subr.mxu0 0.0
    %v688 = vand.u32 %v58, 4294901760
    %689 = vmatpush1.msra.mxu0 %v688
    %690 = vmatprep.subr.mxu0 0.0
    %v691 = vand.u32 %v59, 4294901760
    %692 = vmatpush1.msra.mxu0 %v691
    %693 = vmatprep.subr.mxu0 0.0
    %v694 = vand.u32 %v60, 4294901760
    %695 = vmatpush1.msra.mxu0 %v694
    %696 = vmatprep.subr.mxu0 0.0
    %v697 = vand.u32 %v61, 4294901760
    %698 = vmatpush1.msra.mxu0 %v697
    %699 = vmatprep.subr.mxu0 0.0
    %v700 = vand.u32 %v62, 4294901760
    %701 = vmatpush1.msra.mxu0 %v700
    %702 = vmatprep.subr.mxu0 0.0
    %703 = vmatpush1.msra.mxu0 0.0
    %704 = vmatprep.subr.mxu0 0.0
    %705 = vmatpush1.msra.mxu0 0.0
    %706 = vmatprep.subr.mxu0 0.0
    %707 = vmatpush1.msra.mxu0 0.0
    %708 = vmatprep.subr.mxu0 0.0
    %709 = vmatpush1.msra.mxu0 0.0
    %710 = vmatprep.subr.mxu0 0.0
    %711 = vmatpush1.msra.mxu0 0.0
    %712 = vmatprep.subr.mxu0 0.0
    %713 = vmatpush1.msra.mxu0 0.0
    %714 = vmatprep.subr.mxu0 0.0
    %715 = vmatpush1.msra.mxu0 0.0
    %716 = vmatprep.subr.mxu0 0.0
    %717 = vmatpush1.msra.mxu0 0.0
    %718 = vmatprep.subr.mxu0 0.0
    %719 = vmatpush1.msra.mxu0 0.0
    %720 = vmatprep.subr.mxu0 0.0
    %721 = vmatpush1.msra.mxu0 0.0
    %722 = vmatprep.subr.mxu0 0.0
    %723 = vmatpush1.msra.mxu0 0.0
    %724 = vmatprep.subr.mxu0 0.0
    %725 = vmatpush1.msra.mxu0 0.0
    %726 = vmatprep.subr.mxu0 0.0
    %727 = vmatpush1.msra.mxu0 0.0
    %728 = vmatprep.subr.mxu0 0.0
    %729 = vmatpush1.msra.mxu0 0.0
    %730 = vmatprep.subr.mxu0 0.0
    %731 = vmatpush1.msra.mxu0 0.0
    %732 = vmatprep.subr.mxu0 0.0
    %733 = vmatpush1.msra.mxu0 0.0
    %734 = vmatprep.mubr.f32.mxu0 0.0
    %v735 = vand.u32 %v45, 4294901760
    %736 = vmatmul.mubr.f32.gmra.mrb[0].mxu0 %v735
    %v737 = vpop.f32.mrb[0].mxu0
    %v738 = vadd.f32 %v645, %v737
    %v739 = vpop.f32.mrb[0].mxu0
    %740 = vmatprep.mubr.f32.mxu0 0.0
    %v741 = vand.u32 %v46, 4294901760
    %742 = vmatmul.mubr.f32.gmra.mrb[0].mxu0 %v741
    %v743 = vpop.f32.mrb[0].mxu0
    %v744 = vadd.f32 %v651, %v743
    %v745 = vpop.f32.mrb[0].mxu0
    %746 = vdwg.mxu0
    %747 = vmax.xlane.f32.xlu0 %v738
    %v748 = vpop.xlane.xlu0 %747
    %749 = vmax.xlane.f32.xlu0 %v744
    %v750 = vpop.xlane.xlu0 %749
    %v751 = vsub.f32 %v738, %v748
    %v752 = vsub.f32 %v744, %v750
    %v753 = vmul.f32 %v751, 1.442695
    %v754 = vpow.pop %v753
    %v755 = vmul.f32 %v752, 1.442695
    %v756 = vpow.pop %v755
    %757 = vadd.xlane.f32.xlu0 %v754
    %v758 = vpop.xlane.xlu0 %757
    %759 = vadd.xlane.f32.xlu0 %v756
    %v760 = vpop.xlane.xlu0 %759
    %v761 = vlog2.pop %v758
    %v762 = vmul.f32 %v761, 0.6931472
    %v763 = vlog2.pop %v760
    %v764 = vmul.f32 %v763, 0.6931472
    %v765 = vadd.f32 %v748, %v762
    %v766 = vadd.f32 %v750, %v764
    %767 = vset.pattern.permute.xlu0 1
    %768 = vperm.xlu0 %767, %v29
    %v769 = vpop.permute.xlu0 %768
    %770 = vset.pattern.permute.xlu0 1
    %771 = vperm.xlu0 %770, %v30
    %v772 = vpop.permute.xlu0 %771
    %vm773 = vcmp.eq.s32.totalorder %v34, %v769
    %vm774 = vcmp.eq.s32.totalorder %v34, %v772
    %v775 = vsel %vm773, %v738, 0.0
    %v776 = vsel %vm774, %v744, 0.0
    %777 = vadd.xlane.f32.xlu0 %v775
    %v778 = vpop.xlane.xlu0 %777
    %779 = vadd.xlane.f32.xlu0 %v776
    %v780 = vpop.xlane.xlu0 %779
    %v781 = vsub.f32 %v765, %v778
    %v782 = vsub.f32 %v766, %v780
    %v783 = vmul.f32 %v781, %v31
    %v784 = vmul.f32 %v782, %v32
    %787 = vrot.lane.b32.xlu0 %v783, 126
    %v788 = vpop.permute.xlu0 %787
    %789 = vrot.lane.b32.xlu0 %v784, 126
    %v790 = vpop.permute.xlu0 %789
    %vm793 = vcmask 7168
    %v794 = vsel %vm793, %v788, 0.0
    %v795 = vsel %vm793, %v790, 0.0
    %v796 = vadd.f32 %v794, %v795
    %797 = vadd.xlane.f32.xlu0 %v796
    %v798 = vpop.xlane.xlu0 %797
    %v799 = vrot.slane %v798, 4
    %v800 = vadd.f32 %v798, %v799
    %v801 = vrot.slane %v800, 2
    %v802 = vadd.f32 %v800, %v801
    %v803 = vrot.slane %v802, 1
    %v804 = vadd.f32 %v802, %v803
    %s805 = vtos %v804
    %806 = vst [vmem:[#allocation5] sm:$0xff] %v738
    %807 = vst [vmem:[#allocation5 + $0x8] sm:$0xff] %v744
    %v808 = vstv %s805
    %809 = vst [vmem:[#allocation6] sm:$0xff] %v808
    // Predicated region
    $region14: #{tpu_custom_call.1} parent=1 // pred_check
      _
    $region15: #{tpu_custom_call.1} parent=1 // pred_check_branch
      %811 = sbr.rel (0) target = $region17
    $region16: #{tpu_custom_call.1} parent=1 // pred_region
      %s813 = ssub.s32 256, 256
      %814 = vsyncadd [#allocation4], %s813
      %s815 = sshll.u32 [#allocation5], 4
      %s816 = int_to_ptr.vmem [resolvable:$true] %s815
      %821 = dma.vmem_to_hbm [thread:$0]  %s816, 256, %s2, [#allocation4], 128, 128, 8
    $region17: #{tpu_custom_call.1} parent=1 // pred_fallthru
      _
    // Predicated region
    $region18: #{tpu_custom_call.1} parent=1 // pred_check
      _
    $region19: #{tpu_custom_call.1} parent=1 // pred_check_branch
      %823 = sbr.rel (0) target = $region21
    $region20: #{tpu_custom_call.1} parent=1 // pred_region
      %s825 = ssub.s32 128, 128
      %826 = vsyncadd [#allocation7], %s825
      %s828 = sshll.u32 [#allocation6], 4
      %s829 = int_to_ptr.vmem [resolvable:$true] %s828
      %831 = dma.vmem_to_hbm [thread:$0]  %s829, 128, %s3, [#allocation7]
    $region21: #{tpu_custom_call.1} parent=1 // pred_fallthru
      _
    // Predicated region
    $region22: #{tpu_custom_call.1} parent=1 // pred_check
      _
    $region23: #{tpu_custom_call.1} parent=1 // pred_check_branch
      %833 = sbr.rel (0) target = $region25
    $region24: #{tpu_custom_call.1} parent=1 // pred_region
      %834 = dma.done [#allocation4], 256
    $region25: #{tpu_custom_call.1} parent=1 // pred_fallthru
      _
    // Predicated region
    $region26: #{tpu_custom_call.1} parent=1 // pred_check
      _
    $region27: #{tpu_custom_call.1} parent=1 // pred_check_branch
      %836 = sbr.rel (0) target = $region29
    $region28: #{tpu_custom_call.1} parent=1 // pred_region
      %837 = dma.done [#allocation7], 128
    $region29: #{tpu_custom_call.1} parent=1 // pred_fallthru
      _
    %838 = vsyncpa [#allocation3], 1
    %839 = vsyncpa [#allocation4], 1
    %840 = vsyncpa [#allocation7], 1

</llo_original>
